<compile_context>
chip_gen: v5e
topology: v5e:2x2
jax: 0.10.0
libtpu: 0.0.40
codegen_flags: <defaults>
</compile_context>

<pallas_src>
import functools

import jax
import jax.numpy as jnp
from jax.experimental import pallas as pl
from jax.experimental.pallas import tpu as pltpu


def _round_up(x, m):
    return ((x + m - 1) // m) * m


def _cdiv(a, b):
    return -(-a // b)


# --------------------------------------------------------------------------- #
# Kernel
# --------------------------------------------------------------------------- #
def diffusion_kernel(x_ref,                 # [TB, input_dim]  f32 (streamed)
                     d_ref,                 # [TB, LF_N]       f32 (streamed)
                     w01_ref, b01_ref,      # [input_dim, H_PAD] bf16, [1, H_PAD] f32
                     w2_ref, b2_ref,        # [H_PAD, H_PAD]     bf16, [1, H_PAD] f32
                     w3_ref, b3_ref,        # [H_PAD, LF_N]      bf16, [1, LF_N]  f32
                     out_ref,               # [TB, LF_N]       f32
                     *, w_blend):
    cdt = w01_ref.dtype                     # matmul compute dtype (bf16)

    # folded input+h1 Linear, ReLU
    x2 = jnp.maximum(
        jnp.dot(x_ref[...].astype(cdt), w01_ref[...],
                preferred_element_type=jnp.float32) + b01_ref[...], 0.0)
    # h2, ReLU
    x3 = jnp.maximum(
        jnp.dot(x2.astype(cdt), w2_ref[...],
                preferred_element_type=jnp.float32) + b2_ref[...], 0.0)
    # h3, ReLU -> fine_D
    fine_d = jnp.maximum(
        jnp.dot(x3.astype(cdt), w3_ref[...],
                preferred_element_type=jnp.float32) + b3_ref[...], 0.0)

    # blend with low-fidelity geometry prior:
    #   w*fine_d + (1-w)*d  ==  d + w*(fine_d - d)     (one fewer vector multiply)
    d = d_ref[...]
    final_d = d + w_blend * (fine_d - d)

    # TODO(synk): LF_Layer applied as identity here.
    # Hardtanh(min=0, max=1)
    out_ref[...] = jnp.clip(final_d, 0.0, 1.0)


# --------------------------------------------------------------------------- #
# One-time parameter preparation (fold, pad hidden dim, cast to bf16)
# --------------------------------------------------------------------------- #
def prepare_params(params_weights, *, matmul_dtype=jnp.bfloat16):
    """Fold input->h1, pad the hidden dim to 128 and cast matmul weights to bf16.

    params_weights: (W_in, b_in, W1, b1, W2, b2, W3, b3), weights as [in, out].
    Returns (W01, b01, W2, b2, W3, b3) ready to feed diffusion_forward.
    """
    w_in, b_in, w1, b1, w2, b2, w3, b3 = params_weights
    input_dim, hidden = w_in.shape
    lf_n = w3.shape[1]
    h_pad = _round_up(hidden, 128)
    f32 = jnp.float32

    # Fold the activation-free input Linear into h1 (mathematically exact):
    #   relu((x @ W_in + b_in) @ W1 + b1) == relu(x @ (W_in@W1) + (b_in@W1 + b1))
    w01 = (w_in.astype(f32) @ w1.astype(f32))
    b01 = (b_in.astype(f32) @ w1.astype(f32)) + b1.astype(f32)

    # Hidden-dim zero padding is numerically inert (bias pads 0, ReLU(0)=0,
    # padded K-rows of the next weight are 0).  Biases stay f32.
    w01_p = jnp.zeros((input_dim, h_pad), f32).at[:, :hidden].set(w01).astype(matmul_dtype)
    b01_p = jnp.zeros((1, h_pad), f32).at[:, :hidden].set(b01)
    w2_p = jnp.zeros((h_pad, h_pad), f32).at[:hidden, :hidden].set(w2.astype(f32)).astype(matmul_dtype)
    b2_p = jnp.zeros((1, h_pad), f32).at[:, :hidden].set(b2.astype(f32))
    w3_p = jnp.zeros((h_pad, lf_n), f32).at[:hidden, :].set(w3.astype(f32)).astype(matmul_dtype)
    b3_p = jnp.asarray(b3, f32).reshape(1, lf_n)
    return (w01_p, b01_p, w2_p, b2_p, w3_p, b3_p)


# --------------------------------------------------------------------------- #
# Forward wrapper
# --------------------------------------------------------------------------- #
def diffusion_forward(lengths, d_tensor, prepared, w, *, tile_b_max=4096):
    """Pallas-backed forward pass.

    lengths:  [B, input_dim] float32
    d_tensor: [B, LF_N] float32 (precomputed geometry prior)
    prepared: output of prepare_params(...)
    w:        python float blend weight (params['w'], must be <= 1)
    """
    w01, b01, w2, b2, w3, b3 = prepared
    B, input_dim = lengths.shape
    lf_n = d_tensor.shape[1]
    h_pad = w2.shape[0]

    # --- balanced batch tiling ------------------------------------------------
    b8 = _round_up(B, 8)
    num_tiles = _cdiv(b8, tile_b_max)
    if b8 >= 16:
        # Give the parallel axis >= 2 steps so v7x's two TensorCores both get
        # work (no downside on single-TC v5e/v6e).
        num_tiles = max(num_tiles, 2)
    num_tiles = max(num_tiles, 1)
    tile_b = _round_up(_cdiv(b8, num_tiles), 8)   # multiple of 8 (sublane rule)
    b_pad = num_tiles * tile_b                    # waste capped at < 8 rows/tile

    lengths = lengths.astype(jnp.float32)
    d_tensor = d_tensor.astype(jnp.float32)
    if b_pad != B:
        pad = b_pad - B
        lengths = jnp.pad(lengths, ((0, pad), (0, 0)))
        d_tensor = jnp.pad(d_tensor, ((0, pad), (0, 0)))

    # --- specs ------------------------------------------------------------------
    # Streamed per batch-tile; last block dim == full array dim (no lane padding).
    x_spec = pl.BlockSpec((tile_b, input_dim), lambda i: (i, 0))
    d_spec = pl.BlockSpec((tile_b, lf_n), lambda i: (i, 0))
    o_spec = pl.BlockSpec((tile_b, lf_n), lambda i: (i, 0))

    # Weights/biases: constant block index -> DMA'd once, resident in VMEM.
    def const_spec(arr):
        return pl.BlockSpec(arr.shape, lambda i: (0, 0))

    in_specs = [
        x_spec, d_spec,
        const_spec(w01), const_spec(b01),
        const_spec(w2), const_spec(b2),
        const_spec(w3), const_spec(b3),
    ]

    # --- cost / VMEM budget -------------------------------------------------------
    flops = 2 * b_pad * (input_dim * h_pad + h_pad * h_pad + h_pad * lf_n)
    wt_bytes = int((w01.size + w2.size + w3.size) * w01.dtype.itemsize
                   + (b01.size + b2.size + b3.size) * 4)
    bytes_accessed = 4 * b_pad * (input_dim + 2 * lf_n) + wt_bytes

    stream_bytes = 2 * 4 * tile_b * (input_dim + 2 * lf_n)          # x/d/out, 2 buffers
    compute_bytes = 4 * tile_b * (2 * h_pad + 2 * lf_n)             # live intermediates
    vmem_limit = int(min(max(2 * (wt_bytes + stream_bytes + compute_bytes) + (4 << 20),
                             16 << 20),
                         48 << 20))                                  # headroom on v7x (64 MiB)

    kernel = functools.partial(diffusion_kernel, w_blend=float(w))

    out_padded = pl.pallas_call(
        kernel,
        grid=(num_tiles,),
        in_specs=in_specs,
        out_specs=o_spec,
        out_shape=jax.ShapeDtypeStruct((b_pad, lf_n), jnp.float32),
        compiler_params=pltpu.CompilerParams(
            dimension_semantics=("parallel",),
            vmem_limit_bytes=vmem_limit,
        ),
        cost_estimate=pl.CostEstimate(
            flops=int(flops), transcendentals=0, bytes_accessed=int(bytes_accessed)),
    )(lengths, d_tensor, w01, b01, w2, b2, w3, b3)

    return out_padded[:B] if b_pad != B else out_padded


# --------------------------------------------------------------------------- #
# Parameter init / geometry stand-in (plain JAX glue, not the hot path)
# --------------------------------------------------------------------------- #
def init_params(key, input_dim, lf_n):
    """Deterministic parameter init mirroring kaiming_uniform_ / uniform_(-0.1, 0.1)."""
    ks = jax.random.split(key, 8)

    def kaiming_uniform(k, fan_in, fan_out):
        # gain = sqrt(2) for relu; bound = gain * sqrt(3 / fan_in)
        bound = jnp.sqrt(2.0) * jnp.sqrt(3.0 / fan_in)
        # stored as [in_features, out_features] (transposed vs torch)
        return jax.random.uniform(k, (fan_in, fan_out), jnp.float32, -bound, bound)

    def bias_uniform(k, fan_out):
        return jax.random.uniform(k, (1, fan_out), jnp.float32, -0.1, 0.1)

    w_in = kaiming_uniform(ks[0], input_dim, 64)
    b_in = bias_uniform(ks[1], 64)
    w1 = kaiming_uniform(ks[2], 64, 64)
    b1 = bias_uniform(ks[3], 64)
    w2 = kaiming_uniform(ks[4], 64, 64)
    b2 = bias_uniform(ks[5], 64)
    w3 = kaiming_uniform(ks[6], 64, lf_n)
    b3 = bias_uniform(ks[7], lf_n)
    return (w_in, b_in, w1, b1, w2, b2, w3, b3)


def make_d_tensor(lengths, lf_n):
    """Deterministic stand-in for G1D(...).get_D + utils.downsample.

    Builds a per-sample piecewise-constant profile of length LF_N from the
    normalized segment lengths, purely in plain JAX.
    """
    B, input_dim = lengths.shape
    norm = lengths / (jnp.sum(jnp.abs(lengths), axis=1, keepdims=True) + 1e-6)
    idx = (jnp.arange(lf_n) * input_dim) // lf_n  # nearest-index downsample map
    return jnp.abs(norm[:, idx]).astype(jnp.float32)


# --------------------------------------------------------------------------- #
# Demo / correctness check
# --------------------------------------------------------------------------- #
if __name__ == "__main__":
    key = jax.random.PRNGKey(0)
    k_in, k_params = jax.random.split(key)

    B = 8          # batch
    INPUT_DIM = 8  # number of segment lengths per sample
    LF_N = 32      # low-fidelity grid size
    W_BLEND = 0.5  # params['w'] (must be <= 1)

    lengths = jax.random.uniform(k_in, (B, INPUT_DIM), jnp.float32, 0.1, 1.0)
    d_tensor = make_d_tensor(lengths, LF_N)
    weights = init_params(k_params, INPUT_DIM, LF_N)
    prepared = prepare_params(weights)          # fold + pad + bf16 cast, once

    out = diffusion_forward(lengths, d_tensor, prepared, W_BLEND)
    out = jax.block_until_ready(out)

    # Pure-JAX f32 reference following the PyTorch forward exactly.
    w_in, b_in, w1, b1, w2, b2, w3, b3 = weights
    x1 = lengths @ w_in + b_in
    x2 = jnp.maximum(x1 @ w1 + b1, 0.0)
    x3 = jnp.maximum(x2 @ w2 + b2, 0.0)
    fine_d = jnp.maximum(x3 @ w3 + b3, 0.0)
    ref = jnp.clip(W_BLEND * fine_d + (1.0 - W_BLEND) * d_tensor, 0.0, 1.0)

    assert out.shape == (B, LF_N)
    max_err = float(jnp.max(jnp.abs(out - ref)))
    # bf16 matmuls (f32 accumulation) against an f32 reference; output is in [0,1].
    assert max_err < 5e-2, f"max abs error {max_err}"

    print("KERNEL_OK")
</pallas_src>

<mosaic_0001>
module attributes {stable_mosaic.version = 11 : i64} {
  func.func @diffusion_kernel(%arg0: i32, %arg1: memref<8x8xf32, #tpu.memory_space<vmem>>, %arg2: memref<8x32xf32, #tpu.memory_space<vmem>>, %arg3: memref<8x128xbf16, #tpu.memory_space<vmem>>, %arg4: memref<1x128xf32, #tpu.memory_space<vmem>>, %arg5: memref<128x128xbf16, #tpu.memory_space<vmem>>, %arg6: memref<1x128xf32, #tpu.memory_space<vmem>>, %arg7: memref<128x32xbf16, #tpu.memory_space<vmem>>, %arg8: memref<1x32xf32, #tpu.memory_space<vmem>>, %arg9: memref<8x32xf32, #tpu.memory_space<vmem>>) attributes {dimension_semantics = [#tpu.dimension_semantics<parallel>], iteration_bounds = array<i64: 1>, scalar_prefetch = 0 : i64, scratch_operands = 0 : i64, tpu.core_type = #tpu.core_type<tc>, window_params = [{transform_indices = @transform_0, window_bounds = array<i64: 8, 8>}, {transform_indices = @transform_1, window_bounds = array<i64: 8, 32>}, {pipeline_mode = #tpu.pipeline_mode<synchronous>, transform_indices = @transform_2, window_bounds = array<i64: 8, 128>}, {pipeline_mode = #tpu.pipeline_mode<synchronous>, transform_indices = @transform_3, window_bounds = array<i64: 1, 128>}, {pipeline_mode = #tpu.pipeline_mode<synchronous>, transform_indices = @transform_4, window_bounds = array<i64: 128, 128>}, {pipeline_mode = #tpu.pipeline_mode<synchronous>, transform_indices = @transform_5, window_bounds = array<i64: 1, 128>}, {pipeline_mode = #tpu.pipeline_mode<synchronous>, transform_indices = @transform_6, window_bounds = array<i64: 128, 32>}, {pipeline_mode = #tpu.pipeline_mode<synchronous>, transform_indices = @transform_7, window_bounds = array<i64: 1, 32>}, {transform_indices = @transform_8, window_bounds = array<i64: 8, 32>}]} {
    %c0 = arith.constant 0 : index
    %c0_0 = arith.constant 0 : index
    %0 = vector.load %arg1[%c0, %c0_0] : memref<8x8xf32, #tpu.memory_space<vmem>>, vector<8x8xf32>
    %1 = arith.truncf %0 : vector<8x8xf32> to vector<8x8xbf16>
    %c0_1 = arith.constant 0 : index
    %c0_2 = arith.constant 0 : index
    %2 = vector.load %arg3[%c0_1, %c0_2] : memref<8x128xbf16, #tpu.memory_space<vmem>>, vector<8x128xbf16>
    %cst = arith.constant dense<0.000000e+00> : vector<8x128xf32>
    %3 = tpu.matmul %1, %2, %cst {dimension_numbers = #tpu.dot_dimension_numbers<[1], [0], [0], [1], [0, 0, 1, 1], [], []>} : vector<8x8xbf16>, vector<8x128xbf16>, vector<8x128xf32> -> vector<8x128xf32>
    %c0_3 = arith.constant 0 : index
    %c0_4 = arith.constant 0 : index
    %4 = vector.load %arg4[%c0_3, %c0_4] : memref<1x128xf32, #tpu.memory_space<vmem>>, vector<1x128xf32>
    %5 = vector.broadcast %4 : vector<1x128xf32> to vector<8x128xf32>
    %6 = arith.addf %3, %5 : vector<8x128xf32>
    %cst_5 = arith.constant 0.000000e+00 : f32
    %7 = vector.broadcast %cst_5 : f32 to vector<8x128xf32>
    %8 = arith.maximumf %6, %7 : vector<8x128xf32>
    %9 = arith.truncf %8 : vector<8x128xf32> to vector<8x128xbf16>
    %c0_6 = arith.constant 0 : index
    %c0_7 = arith.constant 0 : index
    %10 = vector.load %arg5[%c0_6, %c0_7] : memref<128x128xbf16, #tpu.memory_space<vmem>>, vector<128x128xbf16>
    %cst_8 = arith.constant dense<0.000000e+00> : vector<8x128xf32>
    %11 = tpu.matmul %9, %10, %cst_8 {dimension_numbers = #tpu.dot_dimension_numbers<[1], [0], [0], [1], [0, 0, 1, 1], [], []>} : vector<8x128xbf16>, vector<128x128xbf16>, vector<8x128xf32> -> vector<8x128xf32>
    %c0_9 = arith.constant 0 : index
    %c0_10 = arith.constant 0 : index
    %12 = vector.load %arg6[%c0_9, %c0_10] : memref<1x128xf32, #tpu.memory_space<vmem>>, vector<1x128xf32>
    %13 = vector.broadcast %12 : vector<1x128xf32> to vector<8x128xf32>
    %14 = arith.addf %11, %13 : vector<8x128xf32>
    %cst_11 = arith.constant 0.000000e+00 : f32
    %15 = vector.broadcast %cst_11 : f32 to vector<8x128xf32>
    %16 = arith.maximumf %14, %15 : vector<8x128xf32>
    %17 = arith.truncf %16 : vector<8x128xf32> to vector<8x128xbf16>
    %c0_12 = arith.constant 0 : index
    %c0_13 = arith.constant 0 : index
    %18 = vector.load %arg7[%c0_12, %c0_13] : memref<128x32xbf16, #tpu.memory_space<vmem>>, vector<128x32xbf16>
    %cst_14 = arith.constant dense<0.000000e+00> : vector<8x32xf32>
    %19 = tpu.matmul %17, %18, %cst_14 {dimension_numbers = #tpu.dot_dimension_numbers<[1], [0], [0], [1], [0, 0, 1, 1], [], []>} : vector<8x128xbf16>, vector<128x32xbf16>, vector<8x32xf32> -> vector<8x32xf32>
    %c0_15 = arith.constant 0 : index
    %c0_16 = arith.constant 0 : index
    %20 = vector.load %arg8[%c0_15, %c0_16] : memref<1x32xf32, #tpu.memory_space<vmem>>, vector<1x32xf32>
    %21 = vector.broadcast %20 : vector<1x32xf32> to vector<8x32xf32>
    %22 = arith.addf %19, %21 : vector<8x32xf32>
    %cst_17 = arith.constant 0.000000e+00 : f32
    %23 = vector.broadcast %cst_17 : f32 to vector<8x32xf32>
    %24 = arith.maximumf %22, %23 : vector<8x32xf32>
    %c0_18 = arith.constant 0 : index
    %c0_19 = arith.constant 0 : index
    %25 = vector.load %arg2[%c0_18, %c0_19] : memref<8x32xf32, #tpu.memory_space<vmem>>, vector<8x32xf32>
    %26 = arith.subf %24, %25 : vector<8x32xf32>
    %cst_20 = arith.constant 5.000000e-01 : f32
    %27 = vector.broadcast %cst_20 : f32 to vector<8x32xf32>
    %28 = arith.mulf %27, %26 : vector<8x32xf32>
    %29 = arith.addf %25, %28 : vector<8x32xf32>
    %cst_21 = arith.constant 0.000000e+00 : f32
    %cst_22 = arith.constant 1.000000e+00 : f32
    %30 = vector.broadcast %cst_21 : f32 to vector<8x32xf32>
    %31 = arith.maximumf %30, %29 : vector<8x32xf32>
    %32 = vector.broadcast %cst_22 : f32 to vector<8x32xf32>
    %33 = arith.minimumf %32, %31 : vector<8x32xf32>
    %c0_23 = arith.constant 0 : index
    %c0_24 = arith.constant 0 : index
    %34 = vector.load %arg9[%c0_23, %c0_24] : memref<8x32xf32, #tpu.memory_space<vmem>>, vector<8x32xf32>
    tpu.vector_store %arg9[%c0_23, %c0_24], %33 {strides = array<i32>} : memref<8x32xf32, #tpu.memory_space<vmem>>, vector<8x32xf32>,
    return
  }
  func.func @transform_0(%arg0: i32) -> (i32, i32) {
    %c0_i32 = arith.constant 0 : i32
    %c0_i32_0 = arith.constant 0 : i32
    return %arg0, %c0_i32 : i32, i32
  }
  func.func @transform_1(%arg0: i32) -> (i32, i32) {
    %c0_i32 = arith.constant 0 : i32
    %c0_i32_0 = arith.constant 0 : i32
    return %arg0, %c0_i32 : i32, i32
  }
  func.func @transform_2(%arg0: i32) -> (i32, i32) {
    %c0_i32 = arith.constant 0 : i32
    %c0_i32_0 = arith.constant 0 : i32
    %c0_i32_1 = arith.constant 0 : i32
    return %c0_i32, %c0_i32_0 : i32, i32
  }
  func.func @transform_3(%arg0: i32) -> (i32, i32) {
    %c0_i32 = arith.constant 0 : i32
    %c0_i32_0 = arith.constant 0 : i32
    %c0_i32_1 = arith.constant 0 : i32
    return %c0_i32, %c0_i32_0 : i32, i32
  }
  func.func @transform_4(%arg0: i32) -> (i32, i32) {
    %c0_i32 = arith.constant 0 : i32
    %c0_i32_0 = arith.constant 0 : i32
    %c0_i32_1 = arith.constant 0 : i32
    return %c0_i32, %c0_i32_0 : i32, i32
  }
  func.func @transform_5(%arg0: i32) -> (i32, i32) {
    %c0_i32 = arith.constant 0 : i32
    %c0_i32_0 = arith.constant 0 : i32
    %c0_i32_1 = arith.constant 0 : i32
    return %c0_i32, %c0_i32_0 : i32, i32
  }
  func.func @transform_6(%arg0: i32) -> (i32, i32) {
    %c0_i32 = arith.constant 0 : i32
    %c0_i32_0 = arith.constant 0 : i32
    %c0_i32_1 = arith.constant 0 : i32
    return %c0_i32, %c0_i32_0 : i32, i32
  }
  func.func @transform_7(%arg0: i32) -> (i32, i32) {
    %c0_i32 = arith.constant 0 : i32
    %c0_i32_0 = arith.constant 0 : i32
    %c0_i32_1 = arith.constant 0 : i32
    return %c0_i32, %c0_i32_0 : i32, i32
  }
  func.func @transform_8(%arg0: i32) -> (i32, i32) {
    %c0_i32 = arith.constant 0 : i32
    %c0_i32_0 = arith.constant 0 : i32
    return %arg0, %c0_i32 : i32, i32
  }
}

</mosaic_0001>

<llo_original>
// kernel: tpu_custom_call.1
$region0: #{tpu_custom_call.1}
  #allocation0 [shape = 'u32[]', space=smem, size = 0x4, offset = 0x4, fixed_abs, tag = 'smem constant byte address 0x4 - core index']
  #allocation1 [shape = 'u32[72,128]{1,0:T(1,128)}', space=vmem, size = 0x9000, scoped, tag = 'internal scratch']
  %s0 = inlined_call_operand.vmem [shape: f32[8,8], index: 0, kind: input, shape index: {}]
  %s1 = inlined_call_operand.vmem [shape: f32[8,32], index: 1, kind: input, shape index: {}]
  %s2 = inlined_call_operand.hbm [shape: bf16[8,128], index: 2, kind: input, shape index: {}]
  %s3 = inlined_call_operand.vmem [shape: f32[1,128], index: 3, kind: input, shape index: {}]
  %s4 = inlined_call_operand.vmem [shape: bf16[128,128], index: 4, kind: input, shape index: {}]
  %s5 = inlined_call_operand.vmem [shape: f32[1,128], index: 5, kind: input, shape index: {}]
  %s6 = inlined_call_operand.vmem [shape: bf16[128,32], index: 6, kind: input, shape index: {}]
  %s7 = inlined_call_operand.vmem [shape: f32[1,32], index: 7, kind: input, shape index: {}]
  %s8 = inlined_call_operand.hbm [shape: f32[8,32], index: 8, kind: output, shape index: {}]
  %s9 = sld [smem:[#allocation0]]
  $region46: #{tpu_custom_call.1} parent=0
    _
  %s11 = ssub.s32 1, %s9
  %s12 = scalar_select 0, %s11, %s9
  $region1: #{tpu_custom_call.1} parent=0
    #allocation2 [shape = 'u8[2048]{0}', space=vmem, size = 0x800, scoped, tag = 'input window, operand 2, single buffered']
    #allocation3 [shape = 's32[1]{0}', space=sflag, size = 0x4, scoped, tag = 'scoped memory for tpu_custom_call.1']
    #allocation4 [shape = 's32[1]{0}', space=sflag, size = 0x4, scoped, tag = 'scoped memory for tpu_custom_call.1']
    #allocation5 [shape = 'u8[4096]{0}', space=vmem, size = 0x1000, scoped, tag = 'output window, operand 0, single buffered']
    %13 = vsyncpa [#allocation3], 0
    %14 = vsyncpa [#allocation4], 0
    // Predicated region
    $region2: #{tpu_custom_call.1} parent=1 // pred_check
      _
    $region3: #{tpu_custom_call.1} parent=1 // pred_check_branch
      %16 = sbr.rel (0) target = $region5
    $region4: #{tpu_custom_call.1} parent=1 // pred_region
      _
    $region5: #{tpu_custom_call.1} parent=1 // pred_fallthru
      _
    // Predicated region
    $region6: #{tpu_custom_call.1} parent=1 // pred_check
      _
    $region7: #{tpu_custom_call.1} parent=1 // pred_check_branch
      %18 = sbr.rel (0) target = $region9
    $region8: #{tpu_custom_call.1} parent=1 // pred_region
      _
    $region9: #{tpu_custom_call.1} parent=1 // pred_fallthru
      _
    // Predicated region
    $region10: #{tpu_custom_call.1} parent=1 // pred_check
      _
    $region11: #{tpu_custom_call.1} parent=1 // pred_check_branch
      %20 = sbr.rel (0) target = $region13
    $region12: #{tpu_custom_call.1} parent=1 // pred_region
      %22 = vsyncadd [#allocation3], 0
      %s24 = sshll.u32 %s2, 4
      %s25 = int_to_ptr.hbm [resolvable:$true] %s24
      %s26 = sshll.u32 [#allocation2], 4
      %s27 = int_to_ptr.vmem [resolvable:$true] %s26
      %29 = dma.hbm_to_vmem [thread:$0]  %s25, 64, %s27, [#allocation3]
    $region13: #{tpu_custom_call.1} parent=1 // pred_fallthru
      _
    // Predicated region
    $region14: #{tpu_custom_call.1} parent=1 // pred_check
      _
    $region15: #{tpu_custom_call.1} parent=1 // pred_check_branch
      %31 = sbr.rel (0) target = $region17
    $region16: #{tpu_custom_call.1} parent=1 // pred_region
      _
    $region17: #{tpu_custom_call.1} parent=1 // pred_fallthru
      _
    // Predicated region
    $region18: #{tpu_custom_call.1} parent=1 // pred_check
      _
    $region19: #{tpu_custom_call.1} parent=1 // pred_check_branch
      %33 = sbr.rel (0) target = $region21
    $region20: #{tpu_custom_call.1} parent=1 // pred_region
      _
    $region21: #{tpu_custom_call.1} parent=1 // pred_fallthru
      _
    // Predicated region
    $region22: #{tpu_custom_call.1} parent=1 // pred_check
      _
    $region23: #{tpu_custom_call.1} parent=1 // pred_check_branch
      %35 = sbr.rel (0) target = $region25
    $region24: #{tpu_custom_call.1} parent=1 // pred_region
      _
    $region25: #{tpu_custom_call.1} parent=1 // pred_fallthru
      _
    // Predicated region
    $region26: #{tpu_custom_call.1} parent=1 // pred_check
      _
    $region27: #{tpu_custom_call.1} parent=1 // pred_check_branch
      %37 = sbr.rel (0) target = $region29
    $region28: #{tpu_custom_call.1} parent=1 // pred_region
      _
    $region29: #{tpu_custom_call.1} parent=1 // pred_fallthru
      _
    // Predicated region
    $region30: #{tpu_custom_call.1} parent=1 // pred_check
      _
    $region31: #{tpu_custom_call.1} parent=1 // pred_check_branch
      %39 = sbr.rel (0) target = $region33
    $region32: #{tpu_custom_call.1} parent=1 // pred_region
      _
    $region33: #{tpu_custom_call.1} parent=1 // pred_fallthru
      _
    // Predicated region
    $region34: #{tpu_custom_call.1} parent=1 // pred_check
      _
    $region35: #{tpu_custom_call.1} parent=1 // pred_check_branch
      %41 = sbr.rel (0) target = $region37
    $region36: #{tpu_custom_call.1} parent=1 // pred_region
      %43 = dma.done [#allocation3], 64
    $region37: #{tpu_custom_call.1} parent=1 // pred_fallthru
      _
    %v45 = vld [vmem:[%s0] sm:$0xff]
    %v46 = vpack.c.bf16 %v45, %v45
    %v47 = vld [vmem:[#allocation2] sm:$0xf]
    %v48 = vld [vmem:[%s3] sm:$0x1]
    %v50 = vperm.slane %v48, 0
    %vm52 = vcmask 64512
    %v54 = vsel %vm52, %v46, 0
    %vm56 = vcmask 1043456
    %v58 = vsel %vm56, %v47, 0
    %60 = vmatpush.bf16.msra.mxu0 0
    %61 = vmatpush.bf16.msra.mxu0 0
    %62 = vmatpush.bf16.msra.mxu0 0
    %63 = vmatpush.bf16.msra.mxu0 0
    %64 = vmatpush.bf16.msra.mxu0 0
    %65 = vmatpush.bf16.msra.mxu0 0
    %66 = vmatpush.bf16.msra.mxu0 0
    %67 = vmatpush.bf16.msra.mxu0 %v58
    %68 = vmatmul.bf16.gmra.mxu0 %v54
    %v69 = vpop.f32.mrf.mxu0
    %v70 = vadd.f32 %v50, %v69
    %v71 = vpop.f32.mrf.mxu0
    %72 = vdwg.mxu0
    %v73 = vmax.f32 %v70, 0.0
    %v74 = vpack.c.bf16 %v73, %v73
    %v75 = vld [vmem:[%s4] sm:$0xf]
    %v76 = vld [vmem:[%s4 + $0x4] sm:$0xf]
    %v77 = vld [vmem:[%s4 + $0x8] sm:$0xf]
    %v78 = vld [vmem:[%s4 + $0xc] sm:$0xf]
    %v79 = vld [vmem:[%s4 + $0x10] sm:$0xf]
    %v80 = vld [vmem:[%s4 + $0x14] sm:$0xf]
    %v81 = vld [vmem:[%s4 + $0x18] sm:$0xf]
    %v82 = vld [vmem:[%s4 + $0x1c] sm:$0xf]
    %v83 = vld [vmem:[%s4 + $0x20] sm:$0xf]
    %v84 = vld [vmem:[%s4 + $0x24] sm:$0xf]
    %v85 = vld [vmem:[%s4 + $0x28] sm:$0xf]
    %v86 = vld [vmem:[%s4 + $0x2c] sm:$0xf]
    %v87 = vld [vmem:[%s4 + $0x30] sm:$0xf]
    %v88 = vld [vmem:[%s4 + $0x34] sm:$0xf]
    %v89 = vld [vmem:[%s4 + $0x38] sm:$0xf]
    %v90 = vld [vmem:[%s4 + $0x3c] sm:$0xf]
    %v91 = vld [vmem:[%s5] sm:$0x1]
    %v93 = vperm.slane %v91, 0
    %v111 = vunpack.c.l.b16 %v75
    %v112 = vunpack.c.l.b16 %v76
    %v113 = vunpack.c.l.b16 %v77
    %v114 = vunpack.c.l.b16 %v78
    %v115 = vunpack.c.l.b16 %v79
    %v116 = vunpack.c.l.b16 %v80
    %v117 = vunpack.c.l.b16 %v81
    %v118 = vunpack.c.l.b16 %v82
    %v119 = vunpack.c.l.b16 %v83
    %v120 = vunpack.c.l.b16 %v84
    %v121 = vunpack.c.l.b16 %v85
    %v122 = vunpack.c.l.b16 %v86
    %v123 = vunpack.c.l.b16 %v87
    %v124 = vunpack.c.l.b16 %v88
    %v125 = vunpack.c.l.b16 %v89
    %v126 = vunpack.c.l.b16 %v90
    %v127 = vpack.c.b16 %v112, %v111
    %v128 = vpack.c.b16 %v114, %v113
    %v129 = vpack.c.b16 %v116, %v115
    %v130 = vpack.c.b16 %v118, %v117
    %v131 = vpack.c.b16 %v120, %v119
    %v132 = vpack.c.b16 %v122, %v121
    %v133 = vpack.c.b16 %v124, %v123
    %v134 = vpack.c.b16 %v126, %v125
    %143 = vmatpush.bf16.msra.mxu0 %v134
    %144 = vmatpush.bf16.msra.mxu0 %v133
    %145 = vmatpush.bf16.msra.mxu0 %v132
    %146 = vmatpush.bf16.msra.mxu0 %v131
    %147 = vmatpush.bf16.msra.mxu0 %v130
    %148 = vmatpush.bf16.msra.mxu0 %v129
    %149 = vmatpush.bf16.msra.mxu0 %v128
    %150 = vmatpush.bf16.msra.mxu0 %v127
    %151 = vmatmul.bf16.gmra.mxu0 %v74
    %v152 = vpop.f32.mrf.mxu0
    %v153 = vadd.f32 %v93, %v152
    %v154 = vpop.f32.mrf.mxu0
    %155 = vdwg.mxu0
    %v156 = vmax.f32 %v153, 0.0
    %v157 = vpack.c.bf16 %v156, %v156
    %v158 = vld [vmem:[%s6] sm:$0xf]
    %v159 = vld [vmem:[%s6 + $0x4] sm:$0xf]
    %v160 = vld [vmem:[%s6 + $0x8] sm:$0xf]
    %v161 = vld [vmem:[%s6 + $0xc] sm:$0xf]
    %v162 = vld [vmem:[%s6 + $0x10] sm:$0xf]
    %v163 = vld [vmem:[%s6 + $0x14] sm:$0xf]
    %v164 = vld [vmem:[%s6 + $0x18] sm:$0xf]
    %v165 = vld [vmem:[%s6 + $0x1c] sm:$0xf]
    %v166 = vld [vmem:[%s6 + $0x20] sm:$0xf]
    %v167 = vld [vmem:[%s6 + $0x24] sm:$0xf]
    %v168 = vld [vmem:[%s6 + $0x28] sm:$0xf]
    %v169 = vld [vmem:[%s6 + $0x2c] sm:$0xf]
    %v170 = vld [vmem:[%s6 + $0x30] sm:$0xf]
    %v171 = vld [vmem:[%s6 + $0x34] sm:$0xf]
    %v172 = vld [vmem:[%s6 + $0x38] sm:$0xf]
    %v173 = vld [vmem:[%s6 + $0x3c] sm:$0xf]
    %v174 = vld [vmem:[%s7] sm:$0x1]
    %v176 = vperm.slane %v174, 0
    %v194 = vunpack.c.l.b16 %v158
    %v195 = vunpack.c.l.b16 %v159
    %v196 = vunpack.c.l.b16 %v160
    %v197 = vunpack.c.l.b16 %v161
    %v198 = vunpack.c.l.b16 %v162
    %v199 = vunpack.c.l.b16 %v163
    %v200 = vunpack.c.l.b16 %v164
    %v201 = vunpack.c.l.b16 %v165
    %v202 = vunpack.c.l.b16 %v166
    %v203 = vunpack.c.l.b16 %v167
    %v204 = vunpack.c.l.b16 %v168
    %v205 = vunpack.c.l.b16 %v169
    %v206 = vunpack.c.l.b16 %v170
    %v207 = vunpack.c.l.b16 %v171
    %v208 = vunpack.c.l.b16 %v172
    %v209 = vunpack.c.l.b16 %v173
    %v210 = vpack.c.b16 %v195, %v194
    %v211 = vpack.c.b16 %v197, %v196
    %v212 = vpack.c.b16 %v199, %v198
    %v213 = vpack.c.b16 %v201, %v200
    %v214 = vpack.c.b16 %v203, %v202
    %v215 = vpack.c.b16 %v205, %v204
    %v216 = vpack.c.b16 %v207, %v206
    %v217 = vpack.c.b16 %v209, %v208
    %226 = vmatpush.bf16.msra.mxu0 %v217
    %227 = vmatpush.bf16.msra.mxu0 %v216
    %228 = vmatpush.bf16.msra.mxu0 %v215
    %229 = vmatpush.bf16.msra.mxu0 %v214
    %230 = vmatpush.bf16.msra.mxu0 %v213
    %231 = vmatpush.bf16.msra.mxu0 %v212
    %232 = vmatpush.bf16.msra.mxu0 %v211
    %233 = vmatpush.bf16.msra.mxu0 %v210
    %234 = vmatmul.bf16.gmra.mxu0 %v157
    %v235 = vpop.f32.mrf.mxu0
    %v236 = vadd.f32 %v176, %v235
    %v237 = vpop.f32.mrf.mxu0
    %238 = vdwg.mxu0
    %v239 = vmax.f32 %v236, 0.0
    %v240 = vld [vmem:[%s1] sm:$0xff]
    %v241 = vsub.f32 %v239, %v240
    %v242 = vmul.f32 %v241, 0.5
    %v243 = vadd.f32 %v240, %v242
    %v244 = vmax.f32 %v243, 0.0
    %v245 = vmin.f32 %v244, 1.0
    %vm246 = vcmask 261120
    %247 = vst.msk [vmem:[#allocation5] sm:$0xff] %vm246, %v245
    // Predicated region
    $region38: #{tpu_custom_call.1} parent=1 // pred_check
      _
    $region39: #{tpu_custom_call.1} parent=1 // pred_check_branch
      %249 = sbr.rel (0) target = $region41
    $region40: #{tpu_custom_call.1} parent=1 // pred_region
      %251 = vsyncadd [#allocation4], 0
      %s253 = sshll.u32 [#allocation5], 4
      %s254 = int_to_ptr.vmem [resolvable:$true] %s253
      %s255 = sshll.u32 %s8, 4
      %s256 = int_to_ptr.hbm [resolvable:$true] %s255
      %258 = dma.vmem_to_hbm [thread:$0]  %s254, 128, %s256, [#allocation4]
    $region41: #{tpu_custom_call.1} parent=1 // pred_fallthru
      _
    // Predicated region
    $region42: #{tpu_custom_call.1} parent=1 // pred_check
      _
    $region43: #{tpu_custom_call.1} parent=1 // pred_check_branch
      %260 = sbr.rel (0) target = $region45
    $region44: #{tpu_custom_call.1} parent=1 // pred_region
      %262 = dma.done [#allocation4], 128
    $region45: #{tpu_custom_call.1} parent=1 // pred_fallthru
      _
    %263 = vsyncpa [#allocation3], 1
    %264 = vsyncpa [#allocation4], 1

</llo_original>
